<compile_context>
chip_gen: v7x
topology: tpu7x:2x2x1
jax: 0.10.0
libtpu: 0.0.40
codegen_flags: <defaults>
</compile_context>

<pallas_src>
import numpy as np
import jax
import jax.numpy as jnp
from jax import lax
from jax.experimental import pallas as pl
from jax.experimental.pallas import tpu as pltpu

# ----------------------------- db3 wavelet filters (pywt 'db3') --------------
_DB3_DEC_LO = [0.035226291882100656, -0.08544127388224149, -0.13501102001039084,
               0.4598775021193313, 0.8068915093133388, 0.3326705529509569]
_DB3_DEC_HI = [-0.3326705529509569, 0.8068915093133388, -0.4598775021193313,
               -0.13501102001039084, 0.08544127388224149, 0.035226291882100656]
_DB3_REC_LO = _DB3_DEC_LO[::-1]
_DB3_REC_HI = _DB3_DEC_HI[::-1]
_L = 6
_L2 = 3

_LANES = 128   # vreg lane width; the packed (subband, batch) axis pads to this


# ================== Pallas kernel: per-lane valid cross-correlation ==========
def _make_conv_kernel(fs, S_out, cH):
    """Valid cross-correlation with an independent (fs, fs) filter per lane.

    x_ref : (S_out + fs - 1, S_out + fs - 1, 128)  pre-padded canvas (circular
            halos built outside), full block, constant index map.
    w_ref : (fs, fs, 128)  per-lane filter taps.
    o_ref : (cH, S_out, 128)  one H row-chunk of the output per grid step.

    Structure: j (W tap) outer -> one misaligned sublane slab load per j;
    i (H tap) inner -> free leading-dim slices of that slab; pure VPU
    multiply-accumulate in f32; single full-width unmasked store at the end.
    """
    def kernel(x_ref, w_ref, o_ref):
        h0 = pl.multiple_of(pl.program_id(0) * cH, cH)
        w = w_ref[...]                                          # (fs, fs, 128) - tiny
        acc = None
        for j in range(fs):
            # one sublane-offset slab per W tap: rows [h0, h0+cH+fs-1), cols [j, j+S_out)
            slab = x_ref[pl.ds(h0, cH + fs - 1), pl.ds(j, S_out), :]
            for i in range(fs):
                term = w[i:i + 1, j:j + 1, :] * slab[i:i + cH]  # leading-dim slice: free offset
                acc = term if acc is None else acc + term       # first-tap init (no zeros pass)
        o_ref[...] = acc.astype(o_ref.dtype)

    return kernel


def _fused_band_convs(ll, Yh, conv_h_w, conv_l_w, J):
    """All learnable circular convs of the forward in ONE lane-dense pallas_call.

    Equivalent to nn.Conv2d(1, 1, fs_j, padding=(fs_j-1)//2, padding_mode='circular',
    bias=False) applied independently to every subband.  Each subband (size S_j,
    filter fs_j) is wrap-padded by p_j and placed at offset (p_max - p_j) inside a
    common (S_1 + 2*p_1)^2 canvas; its filter is zero-padded (centered) to fs_1.
    Zero taps contribute nothing, so the result on the top-left S_j x S_j block is
    exactly the circular 'same' conv of that subband.
    """
    items = []                                    # (band (B,S,S), filter (fs,fs))
    for j in range(1, J + 1):
        lh, hl, hh = Yh[j - 1]
        for k, band in enumerate((lh, hl, hh)):
            items.append((band, conv_h_w[(j - 1) * 3 + k]))
    items.append((ll, conv_l_w))                  # low band (fs_J, same as level J)

    nb = len(items)
    B = int(items[0][0].shape[0])
    sizes = [int(b.shape[1]) for b, _ in items]
    fss = [int(w.shape[0]) for _, w in items]
    S_max, fs_max = max(sizes), max(fss)
    p_max = (fs_max - 1) // 2
    Sp = S_max + 2 * p_max
    C = _LANES
    # TODO(synk): chunk the lane axis (extra grid dim) instead of asserting for large B.
    assert nb * B <= C
    cH = min(8, S_max)
    assert S_max % cH == 0

    canvases, filts = [], []
    for (band, filt), S, fs in zip(items, sizes, fss):
        p = (fs - 1) // 2
        assert fs % 2 == 1 and p < S              # single-period circular wrap only
        d = p_max - p
        xb = jnp.pad(band.astype(jnp.float32), ((0, 0), (p, p), (p, p)), mode="wrap")
        xb = jnp.pad(xb, ((0, 0),
                          (d, Sp - (S + 2 * p) - d),
                          (d, Sp - (S + 2 * p) - d)))           # place in canvas, zeros elsewhere
        canvases.append(xb)
        filts.append(jnp.pad(filt.astype(jnp.float32), ((d, d), (d, d))))  # centered -> fs_max

    # ---- pack (subband, batch) into the 128-lane minor axis --------------------
    x = jnp.stack(canvases, axis=0).reshape(nb * B, Sp, Sp)     # lane = item*B + b
    x = jnp.transpose(x, (1, 2, 0))                             # (Sp, Sp, nb*B)
    x = jnp.pad(x, ((0, 0), (0, 0), (0, C - nb * B)))           # lane-pad to 128

    w = jnp.stack(filts, axis=0)                                # (nb, fs_max, fs_max)
    w = jnp.repeat(w, B, axis=0)                                # (nb*B, fs_max, fs_max)
    w = jnp.transpose(w, (1, 2, 0))
    w = jnp.pad(w, ((0, 0), (0, 0), (0, C - nb * B)))

    y = pl.pallas_call(
        _make_conv_kernel(fs_max, S_max, cH),
        out_shape=jax.ShapeDtypeStruct((S_max, S_max, C), jnp.float32),
        grid=(S_max // cH,),
        in_specs=[pl.BlockSpec((Sp, Sp, C), lambda h: (0, 0, 0)),
                  pl.BlockSpec((fs_max, fs_max, C), lambda h: (0, 0, 0))],
        out_specs=pl.BlockSpec((cH, S_max, C), lambda h: (h, 0, 0)),
        compiler_params=pltpu.CompilerParams(
            dimension_semantics=("parallel",),            # shards H chunks on v7x's 2 TCs
            vmem_limit_bytes=32 * 1024 * 1024),
    )(x, w)

    # ---- unpack -----------------------------------------------------------------
    y = jnp.transpose(y[:, :, :nb * B], (2, 0, 1)).reshape(nb, B, S_max, S_max)
    return [y[i, :, :sizes[i], :sizes[i]] for i in range(nb)]


# ------------------- periodization-mode DWT / IDWT (fused XLA glue) ----------
def _afb1d_per(x, axis):
    """pytorch_wavelets lowlevel.afb1d, mode='periodization', along `axis`
    (1 = H, 2 = W) of a (B, H, W) array.  Returns (lowpass, highpass)."""
    N = x.shape[axis]
    assert N % 2 == 0 and N // 2 >= _L2
    N2 = N // 2
    x4 = x[:, None]                                    # (B, 1, H, W)
    ax = axis + 1                                      # NCHW spatial axis
    x4 = jnp.roll(x4, -_L2, axis=ax)
    k = jnp.asarray([_DB3_DEC_LO[::-1], _DB3_DEC_HI[::-1]], dtype=x.dtype)
    if ax == 2:
        k = k.reshape(2, 1, _L, 1)
        strides, pad = (2, 1), [(_L - 1, _L - 1), (0, 0)]
    else:
        k = k.reshape(2, 1, 1, _L)
        strides, pad = (1, 2), [(0, 0), (_L - 1, _L - 1)]
    y = lax.conv_general_dilated(
        x4, k, window_strides=strides, padding=pad,
        dimension_numbers=('NCHW', 'OIHW', 'NCHW'),
        precision=lax.Precision.HIGHEST)
    head = (lax.slice_in_dim(y, 0, _L2, axis=ax) +
            lax.slice_in_dim(y, N2, N2 + _L2, axis=ax))
    rest = lax.slice_in_dim(y, _L2, N2, axis=ax)
    y = jnp.concatenate([head, rest], axis=ax)         # (B, 2, ., .)
    return y[:, 0], y[:, 1]


def _sfb1d_per(lo, hi, axis):
    """pytorch_wavelets lowlevel.sfb1d, mode='periodization', along `axis`."""
    Nin = lo.shape[axis]
    N = 2 * Nin
    ax = axis + 1
    x4 = jnp.stack([lo, hi], axis=1)                   # (B, 2, H, W)
    k = jnp.asarray([_DB3_REC_LO[::-1], _DB3_REC_HI[::-1]], dtype=lo.dtype)
    if ax == 2:
        k = k.reshape(1, 2, _L, 1)
        dil, pad = (2, 1), [(_L - 1, _L - 1), (0, 0)]
    else:
        k = k.reshape(1, 2, 1, _L)
        dil, pad = (1, 2), [(0, 0), (_L - 1, _L - 1)]
    y = lax.conv_general_dilated(
        x4, k, window_strides=(1, 1), padding=pad, lhs_dilation=dil,
        dimension_numbers=('NCHW', 'OIHW', 'NCHW'),
        precision=lax.Precision.HIGHEST)
    head = (lax.slice_in_dim(y, 0, _L - 2, axis=ax) +
            lax.slice_in_dim(y, N, N + _L - 2, axis=ax))
    rest = lax.slice_in_dim(y, _L - 2, N, axis=ax)
    y = jnp.concatenate([head, rest], axis=ax)
    y = jnp.roll(y, 1 - _L2, axis=ax)
    return y[:, 0]


def _dwt2_per(x):
    """One AFB2D level (C=1): (ll, (lh, hl, hh)) matching pytorch_wavelets ordering."""
    lo_r, hi_r = _afb1d_per(x, axis=2)      # along W
    ll, lh = _afb1d_per(lo_r, axis=1)       # along H
    hl, hh = _afb1d_per(hi_r, axis=1)
    return ll, (lh, hl, hh)


def _idwt2_per(ll, bands):
    """One SFB2D level (C=1)."""
    lh, hl, hh = bands
    lo = _sfb1d_per(ll, lh, axis=1)         # along H
    hi = _sfb1d_per(hl, hh, axis=1)
    return _sfb1d_per(lo, hi, axis=2)       # along W


# ----------------------------- parameters ------------------------------------
def init_params(key, J, filter_size):
    assert filter_size >= 2 ** J
    conv_h = []
    for j in range(1, J + 1):
        fs_j = filter_size // 2 ** j + 1
        assert fs_j % 2 == 1
        bound = 1.0 / np.sqrt(fs_j * fs_j)              # PyTorch Conv2d default bound
        for _ in range(3):
            key, sub = jax.random.split(key)
            conv_h.append(jax.random.uniform(sub, (fs_j, fs_j), jnp.float32, -bound, bound))
    fs_J = filter_size // 2 ** J + 1
    assert fs_J % 2 == 1
    key, sub = jax.random.split(key)
    bound = 1.0 / np.sqrt(fs_J * fs_J)
    conv_l = jax.random.uniform(sub, (fs_J, fs_J), jnp.float32, -bound, bound)
    return conv_h, conv_l


# ----------------------------- LinIdwt2D forward -----------------------------
def lin_idwt2d_forward(Z, conv_h_w, conv_l_w, J):
    """Z: (N, 1, H, W) float32 -> (N, 1, H, W) float32 (NCHW, n_ch = 1)."""
    x = Z[:, 0]

    # ---- DWTForward (J levels, mode='periodization') --------------------------
    Yh = []
    ll = x
    for _ in range(J):
        ll, bands = _dwt2_per(ll)
        Yh.append(bands)

    # ---- learnable circular convs: ONE lane-dense pallas_call for everything --
    outs = _fused_band_convs(ll, Yh, conv_h_w, conv_l_w, J)
    dj = [tuple(outs[(j - 1) * 3 + k] for k in range(3)) for j in range(1, J + 1)]
    aJ = outs[3 * J]

    # ---- DWTInverse (mode='periodization') -------------------------------------
    # TODO(synk): DWTInverse's odd-size "unpad" branch is skipped; all intermediate
    # dims are even here (asserted in _afb1d_per), so it never triggers.
    out = aJ
    for j in range(J, 0, -1):
        out = _idwt2_per(out, dj[j - 1])
    return out[:, None]                                  # (N, 1, H, W)


# ----------------------------- demo ------------------------------------------
if __name__ == "__main__":
    B, im_size, J, filter_size = 2, 16, 2, 8
    key = jax.random.PRNGKey(0)
    kx, kp = jax.random.split(key)
    Z = jax.random.normal(kx, (B, 1, im_size, im_size), jnp.float32)
    conv_h_w, conv_l_w = init_params(kp, J, filter_size)

    fwd = jax.jit(lin_idwt2d_forward, static_argnums=3)
    out = jax.block_until_ready(fwd(Z, conv_h_w, conv_l_w, J))
    assert out.shape == (B, 1, im_size, im_size) and out.dtype == jnp.float32
    assert bool(jnp.all(jnp.isfinite(out)))
    print("KERNEL_OK")
</pallas_src>

<mosaic_0001>
module attributes {stable_mosaic.version = 11 : i64} {
  func.func @kernel(%arg0: i32, %arg1: memref<12x12x128xf32, #tpu.memory_space<vmem>>, %arg2: memref<5x5x128xf32, #tpu.memory_space<vmem>>, %arg3: memref<8x8x128xf32, #tpu.memory_space<vmem>>) attributes {dimension_semantics = [#tpu.dimension_semantics<parallel>], iteration_bounds = array<i64: 1>, scalar_prefetch = 0 : i64, scratch_operands = 0 : i64, tpu.core_type = #tpu.core_type<tc>, window_params = [{pipeline_mode = #tpu.pipeline_mode<synchronous>, transform_indices = @transform_0, window_bounds = array<i64: 12, 12, 128>}, {pipeline_mode = #tpu.pipeline_mode<synchronous>, transform_indices = @transform_1, window_bounds = array<i64: 5, 5, 128>}, {transform_indices = @transform_2, window_bounds = array<i64: 8, 8, 128>}]} {
    %c8_i32 = arith.constant 8 : i32
    %0 = arith.muli %arg0, %c8_i32 : i32
    %1 = tpu.assume_multiple %0, 8 : i32
    %c0 = arith.constant 0 : index
    %c0_0 = arith.constant 0 : index
    %c0_1 = arith.constant 0 : index
    %2 = vector.load %arg2[%c0, %c0_0, %c0_1] : memref<5x5x128xf32, #tpu.memory_space<vmem>>, vector<5x5x128xf32>
    %3 = arith.index_cast %1 : i32 to index
    %c0_2 = arith.constant 0 : index
    %c0_3 = arith.constant 0 : index
    %4 = vector.load %arg1[%3, %c0_2, %c0_3] : memref<12x12x128xf32, #tpu.memory_space<vmem>>, vector<12x8x128xf32>
    %5 = vector.extract_strided_slice %2 {offsets = [0, 0, 0], sizes = [1, 1, 128], strides = [1, 1, 1]} : vector<5x5x128xf32> to vector<1x1x128xf32>
    %6 = vector.extract_strided_slice %4 {offsets = [0, 0, 0], sizes = [8, 8, 128], strides = [1, 1, 1]} : vector<12x8x128xf32> to vector<8x8x128xf32>
    %7 = vector.broadcast %5 : vector<1x1x128xf32> to vector<8x8x128xf32>
    %8 = arith.mulf %7, %6 : vector<8x8x128xf32>
    %9 = vector.extract_strided_slice %2 {offsets = [1, 0, 0], sizes = [1, 1, 128], strides = [1, 1, 1]} : vector<5x5x128xf32> to vector<1x1x128xf32>
    %10 = vector.extract_strided_slice %4 {offsets = [1, 0, 0], sizes = [8, 8, 128], strides = [1, 1, 1]} : vector<12x8x128xf32> to vector<8x8x128xf32>
    %11 = vector.broadcast %9 : vector<1x1x128xf32> to vector<8x8x128xf32>
    %12 = arith.mulf %11, %10 : vector<8x8x128xf32>
    %13 = arith.addf %8, %12 : vector<8x8x128xf32>
    %14 = vector.extract_strided_slice %2 {offsets = [2, 0, 0], sizes = [1, 1, 128], strides = [1, 1, 1]} : vector<5x5x128xf32> to vector<1x1x128xf32>
    %15 = vector.extract_strided_slice %4 {offsets = [2, 0, 0], sizes = [8, 8, 128], strides = [1, 1, 1]} : vector<12x8x128xf32> to vector<8x8x128xf32>
    %16 = vector.broadcast %14 : vector<1x1x128xf32> to vector<8x8x128xf32>
    %17 = arith.mulf %16, %15 : vector<8x8x128xf32>
    %18 = arith.addf %13, %17 : vector<8x8x128xf32>
    %19 = vector.extract_strided_slice %2 {offsets = [3, 0, 0], sizes = [1, 1, 128], strides = [1, 1, 1]} : vector<5x5x128xf32> to vector<1x1x128xf32>
    %20 = vector.extract_strided_slice %4 {offsets = [3, 0, 0], sizes = [8, 8, 128], strides = [1, 1, 1]} : vector<12x8x128xf32> to vector<8x8x128xf32>
    %21 = vector.broadcast %19 : vector<1x1x128xf32> to vector<8x8x128xf32>
    %22 = arith.mulf %21, %20 : vector<8x8x128xf32>
    %23 = arith.addf %18, %22 : vector<8x8x128xf32>
    %24 = vector.extract_strided_slice %2 {offsets = [4, 0, 0], sizes = [1, 1, 128], strides = [1, 1, 1]} : vector<5x5x128xf32> to vector<1x1x128xf32>
    %25 = vector.extract_strided_slice %4 {offsets = [4, 0, 0], sizes = [8, 8, 128], strides = [1, 1, 1]} : vector<12x8x128xf32> to vector<8x8x128xf32>
    %26 = vector.broadcast %24 : vector<1x1x128xf32> to vector<8x8x128xf32>
    %27 = arith.mulf %26, %25 : vector<8x8x128xf32>
    %28 = arith.addf %23, %27 : vector<8x8x128xf32>
    %29 = arith.index_cast %1 : i32 to index
    %c1 = arith.constant 1 : index
    %c0_4 = arith.constant 0 : index
    %30 = vector.load %arg1[%29, %c1, %c0_4] : memref<12x12x128xf32, #tpu.memory_space<vmem>>, vector<12x8x128xf32>
    %31 = vector.extract_strided_slice %2 {offsets = [0, 1, 0], sizes = [1, 1, 128], strides = [1, 1, 1]} : vector<5x5x128xf32> to vector<1x1x128xf32>
    %32 = vector.extract_strided_slice %30 {offsets = [0, 0, 0], sizes = [8, 8, 128], strides = [1, 1, 1]} : vector<12x8x128xf32> to vector<8x8x128xf32>
    %33 = vector.broadcast %31 : vector<1x1x128xf32> to vector<8x8x128xf32>
    %34 = arith.mulf %33, %32 : vector<8x8x128xf32>
    %35 = arith.addf %28, %34 : vector<8x8x128xf32>
    %36 = vector.extract_strided_slice %2 {offsets = [1, 1, 0], sizes = [1, 1, 128], strides = [1, 1, 1]} : vector<5x5x128xf32> to vector<1x1x128xf32>
    %37 = vector.extract_strided_slice %30 {offsets = [1, 0, 0], sizes = [8, 8, 128], strides = [1, 1, 1]} : vector<12x8x128xf32> to vector<8x8x128xf32>
    %38 = vector.broadcast %36 : vector<1x1x128xf32> to vector<8x8x128xf32>
    %39 = arith.mulf %38, %37 : vector<8x8x128xf32>
    %40 = arith.addf %35, %39 : vector<8x8x128xf32>
    %41 = vector.extract_strided_slice %2 {offsets = [2, 1, 0], sizes = [1, 1, 128], strides = [1, 1, 1]} : vector<5x5x128xf32> to vector<1x1x128xf32>
    %42 = vector.extract_strided_slice %30 {offsets = [2, 0, 0], sizes = [8, 8, 128], strides = [1, 1, 1]} : vector<12x8x128xf32> to vector<8x8x128xf32>
    %43 = vector.broadcast %41 : vector<1x1x128xf32> to vector<8x8x128xf32>
    %44 = arith.mulf %43, %42 : vector<8x8x128xf32>
    %45 = arith.addf %40, %44 : vector<8x8x128xf32>
    %46 = vector.extract_strided_slice %2 {offsets = [3, 1, 0], sizes = [1, 1, 128], strides = [1, 1, 1]} : vector<5x5x128xf32> to vector<1x1x128xf32>
    %47 = vector.extract_strided_slice %30 {offsets = [3, 0, 0], sizes = [8, 8, 128], strides = [1, 1, 1]} : vector<12x8x128xf32> to vector<8x8x128xf32>
    %48 = vector.broadcast %46 : vector<1x1x128xf32> to vector<8x8x128xf32>
    %49 = arith.mulf %48, %47 : vector<8x8x128xf32>
    %50 = arith.addf %45, %49 : vector<8x8x128xf32>
    %51 = vector.extract_strided_slice %2 {offsets = [4, 1, 0], sizes = [1, 1, 128], strides = [1, 1, 1]} : vector<5x5x128xf32> to vector<1x1x128xf32>
    %52 = vector.extract_strided_slice %30 {offsets = [4, 0, 0], sizes = [8, 8, 128], strides = [1, 1, 1]} : vector<12x8x128xf32> to vector<8x8x128xf32>
    %53 = vector.broadcast %51 : vector<1x1x128xf32> to vector<8x8x128xf32>
    %54 = arith.mulf %53, %52 : vector<8x8x128xf32>
    %55 = arith.addf %50, %54 : vector<8x8x128xf32>
    %56 = arith.index_cast %1 : i32 to index
    %c2 = arith.constant 2 : index
    %c0_5 = arith.constant 0 : index
    %57 = vector.load %arg1[%56, %c2, %c0_5] : memref<12x12x128xf32, #tpu.memory_space<vmem>>, vector<12x8x128xf32>
    %58 = vector.extract_strided_slice %2 {offsets = [0, 2, 0], sizes = [1, 1, 128], strides = [1, 1, 1]} : vector<5x5x128xf32> to vector<1x1x128xf32>
    %59 = vector.extract_strided_slice %57 {offsets = [0, 0, 0], sizes = [8, 8, 128], strides = [1, 1, 1]} : vector<12x8x128xf32> to vector<8x8x128xf32>
    %60 = vector.broadcast %58 : vector<1x1x128xf32> to vector<8x8x128xf32>
    %61 = arith.mulf %60, %59 : vector<8x8x128xf32>
    %62 = arith.addf %55, %61 : vector<8x8x128xf32>
    %63 = vector.extract_strided_slice %2 {offsets = [1, 2, 0], sizes = [1, 1, 128], strides = [1, 1, 1]} : vector<5x5x128xf32> to vector<1x1x128xf32>
    %64 = vector.extract_strided_slice %57 {offsets = [1, 0, 0], sizes = [8, 8, 128], strides = [1, 1, 1]} : vector<12x8x128xf32> to vector<8x8x128xf32>
    %65 = vector.broadcast %63 : vector<1x1x128xf32> to vector<8x8x128xf32>
    %66 = arith.mulf %65, %64 : vector<8x8x128xf32>
    %67 = arith.addf %62, %66 : vector<8x8x128xf32>
    %68 = vector.extract_strided_slice %2 {offsets = [2, 2, 0], sizes = [1, 1, 128], strides = [1, 1, 1]} : vector<5x5x128xf32> to vector<1x1x128xf32>
    %69 = vector.extract_strided_slice %57 {offsets = [2, 0, 0], sizes = [8, 8, 128], strides = [1, 1, 1]} : vector<12x8x128xf32> to vector<8x8x128xf32>
    %70 = vector.broadcast %68 : vector<1x1x128xf32> to vector<8x8x128xf32>
    %71 = arith.mulf %70, %69 : vector<8x8x128xf32>
    %72 = arith.addf %67, %71 : vector<8x8x128xf32>
    %73 = vector.extract_strided_slice %2 {offsets = [3, 2, 0], sizes = [1, 1, 128], strides = [1, 1, 1]} : vector<5x5x128xf32> to vector<1x1x128xf32>
    %74 = vector.extract_strided_slice %57 {offsets = [3, 0, 0], sizes = [8, 8, 128], strides = [1, 1, 1]} : vector<12x8x128xf32> to vector<8x8x128xf32>
    %75 = vector.broadcast %73 : vector<1x1x128xf32> to vector<8x8x128xf32>
    %76 = arith.mulf %75, %74 : vector<8x8x128xf32>
    %77 = arith.addf %72, %76 : vector<8x8x128xf32>
    %78 = vector.extract_strided_slice %2 {offsets = [4, 2, 0], sizes = [1, 1, 128], strides = [1, 1, 1]} : vector<5x5x128xf32> to vector<1x1x128xf32>
    %79 = vector.extract_strided_slice %57 {offsets = [4, 0, 0], sizes = [8, 8, 128], strides = [1, 1, 1]} : vector<12x8x128xf32> to vector<8x8x128xf32>
    %80 = vector.broadcast %78 : vector<1x1x128xf32> to vector<8x8x128xf32>
    %81 = arith.mulf %80, %79 : vector<8x8x128xf32>
    %82 = arith.addf %77, %81 : vector<8x8x128xf32>
    %83 = arith.index_cast %1 : i32 to index
    %c3 = arith.constant 3 : index
    %c0_6 = arith.constant 0 : index
    %84 = vector.load %arg1[%83, %c3, %c0_6] : memref<12x12x128xf32, #tpu.memory_space<vmem>>, vector<12x8x128xf32>
    %85 = vector.extract_strided_slice %2 {offsets = [0, 3, 0], sizes = [1, 1, 128], strides = [1, 1, 1]} : vector<5x5x128xf32> to vector<1x1x128xf32>
    %86 = vector.extract_strided_slice %84 {offsets = [0, 0, 0], sizes = [8, 8, 128], strides = [1, 1, 1]} : vector<12x8x128xf32> to vector<8x8x128xf32>
    %87 = vector.broadcast %85 : vector<1x1x128xf32> to vector<8x8x128xf32>
    %88 = arith.mulf %87, %86 : vector<8x8x128xf32>
    %89 = arith.addf %82, %88 : vector<8x8x128xf32>
    %90 = vector.extract_strided_slice %2 {offsets = [1, 3, 0], sizes = [1, 1, 128], strides = [1, 1, 1]} : vector<5x5x128xf32> to vector<1x1x128xf32>
    %91 = vector.extract_strided_slice %84 {offsets = [1, 0, 0], sizes = [8, 8, 128], strides = [1, 1, 1]} : vector<12x8x128xf32> to vector<8x8x128xf32>
    %92 = vector.broadcast %90 : vector<1x1x128xf32> to vector<8x8x128xf32>
    %93 = arith.mulf %92, %91 : vector<8x8x128xf32>
    %94 = arith.addf %89, %93 : vector<8x8x128xf32>
    %95 = vector.extract_strided_slice %2 {offsets = [2, 3, 0], sizes = [1, 1, 128], strides = [1, 1, 1]} : vector<5x5x128xf32> to vector<1x1x128xf32>
    %96 = vector.extract_strided_slice %84 {offsets = [2, 0, 0], sizes = [8, 8, 128], strides = [1, 1, 1]} : vector<12x8x128xf32> to vector<8x8x128xf32>
    %97 = vector.broadcast %95 : vector<1x1x128xf32> to vector<8x8x128xf32>
    %98 = arith.mulf %97, %96 : vector<8x8x128xf32>
    %99 = arith.addf %94, %98 : vector<8x8x128xf32>
    %100 = vector.extract_strided_slice %2 {offsets = [3, 3, 0], sizes = [1, 1, 128], strides = [1, 1, 1]} : vector<5x5x128xf32> to vector<1x1x128xf32>
    %101 = vector.extract_strided_slice %84 {offsets = [3, 0, 0], sizes = [8, 8, 128], strides = [1, 1, 1]} : vector<12x8x128xf32> to vector<8x8x128xf32>
    %102 = vector.broadcast %100 : vector<1x1x128xf32> to vector<8x8x128xf32>
    %103 = arith.mulf %102, %101 : vector<8x8x128xf32>
    %104 = arith.addf %99, %103 : vector<8x8x128xf32>
    %105 = vector.extract_strided_slice %2 {offsets = [4, 3, 0], sizes = [1, 1, 128], strides = [1, 1, 1]} : vector<5x5x128xf32> to vector<1x1x128xf32>
    %106 = vector.extract_strided_slice %84 {offsets = [4, 0, 0], sizes = [8, 8, 128], strides = [1, 1, 1]} : vector<12x8x128xf32> to vector<8x8x128xf32>
    %107 = vector.broadcast %105 : vector<1x1x128xf32> to vector<8x8x128xf32>
    %108 = arith.mulf %107, %106 : vector<8x8x128xf32>
    %109 = arith.addf %104, %108 : vector<8x8x128xf32>
    %110 = arith.index_cast %1 : i32 to index
    %c4 = arith.constant 4 : index
    %c0_7 = arith.constant 0 : index
    %111 = vector.load %arg1[%110, %c4, %c0_7] : memref<12x12x128xf32, #tpu.memory_space<vmem>>, vector<12x8x128xf32>
    %112 = vector.extract_strided_slice %2 {offsets = [0, 4, 0], sizes = [1, 1, 128], strides = [1, 1, 1]} : vector<5x5x128xf32> to vector<1x1x128xf32>
    %113 = vector.extract_strided_slice %111 {offsets = [0, 0, 0], sizes = [8, 8, 128], strides = [1, 1, 1]} : vector<12x8x128xf32> to vector<8x8x128xf32>
    %114 = vector.broadcast %112 : vector<1x1x128xf32> to vector<8x8x128xf32>
    %115 = arith.mulf %114, %113 : vector<8x8x128xf32>
    %116 = arith.addf %109, %115 : vector<8x8x128xf32>
    %117 = vector.extract_strided_slice %2 {offsets = [1, 4, 0], sizes = [1, 1, 128], strides = [1, 1, 1]} : vector<5x5x128xf32> to vector<1x1x128xf32>
    %118 = vector.extract_strided_slice %111 {offsets = [1, 0, 0], sizes = [8, 8, 128], strides = [1, 1, 1]} : vector<12x8x128xf32> to vector<8x8x128xf32>
    %119 = vector.broadcast %117 : vector<1x1x128xf32> to vector<8x8x128xf32>
    %120 = arith.mulf %119, %118 : vector<8x8x128xf32>
    %121 = arith.addf %116, %120 : vector<8x8x128xf32>
    %122 = vector.extract_strided_slice %2 {offsets = [2, 4, 0], sizes = [1, 1, 128], strides = [1, 1, 1]} : vector<5x5x128xf32> to vector<1x1x128xf32>
    %123 = vector.extract_strided_slice %111 {offsets = [2, 0, 0], sizes = [8, 8, 128], strides = [1, 1, 1]} : vector<12x8x128xf32> to vector<8x8x128xf32>
    %124 = vector.broadcast %122 : vector<1x1x128xf32> to vector<8x8x128xf32>
    %125 = arith.mulf %124, %123 : vector<8x8x128xf32>
    %126 = arith.addf %121, %125 : vector<8x8x128xf32>
    %127 = vector.extract_strided_slice %2 {offsets = [3, 4, 0], sizes = [1, 1, 128], strides = [1, 1, 1]} : vector<5x5x128xf32> to vector<1x1x128xf32>
    %128 = vector.extract_strided_slice %111 {offsets = [3, 0, 0], sizes = [8, 8, 128], strides = [1, 1, 1]} : vector<12x8x128xf32> to vector<8x8x128xf32>
    %129 = vector.broadcast %127 : vector<1x1x128xf32> to vector<8x8x128xf32>
    %130 = arith.mulf %129, %128 : vector<8x8x128xf32>
    %131 = arith.addf %126, %130 : vector<8x8x128xf32>
    %132 = vector.extract_strided_slice %2 {offsets = [4, 4, 0], sizes = [1, 1, 128], strides = [1, 1, 1]} : vector<5x5x128xf32> to vector<1x1x128xf32>
    %133 = vector.extract_strided_slice %111 {offsets = [4, 0, 0], sizes = [8, 8, 128], strides = [1, 1, 1]} : vector<12x8x128xf32> to vector<8x8x128xf32>
    %134 = vector.broadcast %132 : vector<1x1x128xf32> to vector<8x8x128xf32>
    %135 = arith.mulf %134, %133 : vector<8x8x128xf32>
    %136 = arith.addf %131, %135 : vector<8x8x128xf32>
    %c0_8 = arith.constant 0 : index
    %c0_9 = arith.constant 0 : index
    %c0_10 = arith.constant 0 : index
    %137 = vector.load %arg3[%c0_8, %c0_9, %c0_10] : memref<8x8x128xf32, #tpu.memory_space<vmem>>, vector<8x8x128xf32>
    tpu.vector_store %arg3[%c0_8, %c0_9, %c0_10], %136 {strides = array<i32>} : memref<8x8x128xf32, #tpu.memory_space<vmem>>, vector<8x8x128xf32>,
    return
  }
  func.func @transform_0(%arg0: i32) -> (i32, i32, i32) {
    %c0_i32 = arith.constant 0 : i32
    %c0_i32_0 = arith.constant 0 : i32
    %c0_i32_1 = arith.constant 0 : i32
    %c0_i32_2 = arith.constant 0 : i32
    return %c0_i32, %c0_i32_0, %c0_i32_1 : i32, i32, i32
  }
  func.func @transform_1(%arg0: i32) -> (i32, i32, i32) {
    %c0_i32 = arith.constant 0 : i32
    %c0_i32_0 = arith.constant 0 : i32
    %c0_i32_1 = arith.constant 0 : i32
    %c0_i32_2 = arith.constant 0 : i32
    return %c0_i32, %c0_i32_0, %c0_i32_1 : i32, i32, i32
  }
  func.func @transform_2(%arg0: i32) -> (i32, i32, i32) {
    %c0_i32 = arith.constant 0 : i32
    %c0_i32_0 = arith.constant 0 : i32
    %c0_i32_1 = arith.constant 0 : i32
    return %arg0, %c0_i32, %c0_i32_0 : i32, i32, i32
  }
}

</mosaic_0001>

<llo_original>
// kernel: lin_idwt2d_forward.1
$region0: #{lin_idwt2d_forward.1}
  #allocation0 [shape = 'u32[]', space=smem, size = 0x4, offset = 0x4, fixed_abs, tag = 'smem constant byte address 0x4 - core index']
  #allocation1 [shape = 'u32[144,128]{1,0:T(1,128)}', space=vmem, size = 0x12000, scoped, tag = 'internal scratch']
  %s0 = inlined_call_operand.vmem [shape: f32[12,12,128], index: 0, kind: input, shape index: {}]
  %s1 = inlined_call_operand.vmem [shape: f32[5,5,128], index: 1, kind: input, shape index: {}]
  %s2 = inlined_call_operand.vmem [shape: f32[8,8,128], index: 2, kind: output, shape index: {}]
  %s3 = sld [smem:[#allocation0]]
  $region18: #{lin_idwt2d_forward.1} parent=0
    _
  %s5 = ssub.s32 1, %s3
  %s6 = scalar_select 0, %s5, %s3
  // Predicated region
  $region2: #{lin_idwt2d_forward.1} parent=0 // pred_check
    _
  $region3: #{lin_idwt2d_forward.1} parent=0 // pred_check_branch
    %8 = sbr.rel (0) target = $region5
  $region4: #{lin_idwt2d_forward.1} parent=0 // pred_region
    _
  $region5: #{lin_idwt2d_forward.1} parent=0 // pred_fallthru
    _
  // Predicated region
  $region6: #{lin_idwt2d_forward.1} parent=0 // pred_check
    _
  $region7: #{lin_idwt2d_forward.1} parent=0 // pred_check_branch
    %10 = sbr.rel (0) target = $region9
  $region8: #{lin_idwt2d_forward.1} parent=0 // pred_region
    _
  $region9: #{lin_idwt2d_forward.1} parent=0 // pred_fallthru
    _
  %s11 = smul.u32 0, 8
  %v12 = vld [vmem:[%s1] sm:$0x1f]
  %v13 = vld [vmem:[%s1 + $0x8] sm:$0x1f]
  %v14 = vld [vmem:[%s1 + $0x10] sm:$0x1f]
  %v15 = vld [vmem:[%s1 + $0x18] sm:$0x1f]
  %v16 = vld [vmem:[%s1 + $0x20] sm:$0x1f]
  %s17 = smul.u32 %s11, 16
  %s18 = scalar_lea.vmem %s0, %s17
  %v19 = vld [vmem:[%s18] sm:$0xff]
  %v20 = vld [vmem:[%s18 + $0x10] sm:$0xff]
  %v21 = vld [vmem:[%s18 + $0x20] sm:$0xff]
  %v22 = vld [vmem:[%s18 + $0x30] sm:$0xff]
  %v23 = vld [vmem:[%s18 + $0x40] sm:$0xff]
  %v24 = vld [vmem:[%s18 + $0x50] sm:$0xff]
  %v25 = vld [vmem:[%s18 + $0x60] sm:$0xff]
  %v26 = vld [vmem:[%s18 + $0x70] sm:$0xff]
  %v27 = vld [vmem:[%s18 + $0x80] sm:$0xff]
  %v28 = vld [vmem:[%s18 + $0x90] sm:$0xff]
  %v29 = vld [vmem:[%s18 + $0xa0] sm:$0xff]
  %v30 = vld [vmem:[%s18 + $0xb0] sm:$0xff]
  %v31 = vlaneseq
  %v32 = vshrl.u32 %v31, 7
  %v33 = vsub.s32 0, %v32
  %v34 = vrot.slane %v12, %v33
  %v35 = vmul.f32 %v34, %v19
  %v36 = vmul.f32 %v34, %v20
  %v37 = vmul.f32 %v34, %v21
  %v38 = vmul.f32 %v34, %v22
  %v39 = vmul.f32 %v34, %v23
  %v40 = vmul.f32 %v34, %v24
  %v41 = vmul.f32 %v34, %v25
  %v42 = vmul.f32 %v34, %v26
  %v43 = vlaneseq
  %v44 = vshrl.u32 %v43, 7
  %v45 = vsub.s32 0, %v44
  %v46 = vrot.slane %v13, %v45
  %v47 = vmul.f32 %v46, %v20
  %v48 = vmul.f32 %v46, %v21
  %v49 = vmul.f32 %v46, %v22
  %v50 = vmul.f32 %v46, %v23
  %v51 = vmul.f32 %v46, %v24
  %v52 = vmul.f32 %v46, %v25
  %v53 = vmul.f32 %v46, %v26
  %v54 = vmul.f32 %v46, %v27
  %v55 = vadd.f32 %v35, %v47
  %v56 = vadd.f32 %v36, %v48
  %v57 = vadd.f32 %v37, %v49
  %v58 = vadd.f32 %v38, %v50
  %v59 = vadd.f32 %v39, %v51
  %v60 = vadd.f32 %v40, %v52
  %v61 = vadd.f32 %v41, %v53
  %v62 = vadd.f32 %v42, %v54
  %v63 = vlaneseq
  %v64 = vshrl.u32 %v63, 7
  %v65 = vsub.s32 0, %v64
  %v66 = vrot.slane %v14, %v65
  %v67 = vmul.f32 %v66, %v21
  %v68 = vmul.f32 %v66, %v22
  %v69 = vmul.f32 %v66, %v23
  %v70 = vmul.f32 %v66, %v24
  %v71 = vmul.f32 %v66, %v25
  %v72 = vmul.f32 %v66, %v26
  %v73 = vmul.f32 %v66, %v27
  %v74 = vmul.f32 %v66, %v28
  %v75 = vadd.f32 %v55, %v67
  %v76 = vadd.f32 %v56, %v68
  %v77 = vadd.f32 %v57, %v69
  %v78 = vadd.f32 %v58, %v70
  %v79 = vadd.f32 %v59, %v71
  %v80 = vadd.f32 %v60, %v72
  %v81 = vadd.f32 %v61, %v73
  %v82 = vadd.f32 %v62, %v74
  %v83 = vlaneseq
  %v84 = vshrl.u32 %v83, 7
  %v85 = vsub.s32 0, %v84
  %v86 = vrot.slane %v15, %v85
  %v87 = vmul.f32 %v86, %v22
  %v88 = vmul.f32 %v86, %v23
  %v89 = vmul.f32 %v86, %v24
  %v90 = vmul.f32 %v86, %v25
  %v91 = vmul.f32 %v86, %v26
  %v92 = vmul.f32 %v86, %v27
  %v93 = vmul.f32 %v86, %v28
  %v94 = vmul.f32 %v86, %v29
  %v95 = vadd.f32 %v75, %v87
  %v96 = vadd.f32 %v76, %v88
  %v97 = vadd.f32 %v77, %v89
  %v98 = vadd.f32 %v78, %v90
  %v99 = vadd.f32 %v79, %v91
  %v100 = vadd.f32 %v80, %v92
  %v101 = vadd.f32 %v81, %v93
  %v102 = vadd.f32 %v82, %v94
  %v103 = vlaneseq
  %v104 = vshrl.u32 %v103, 7
  %v105 = vsub.s32 0, %v104
  %v106 = vrot.slane %v16, %v105
  %v107 = vmul.f32 %v106, %v23
  %v108 = vmul.f32 %v106, %v24
  %v109 = vmul.f32 %v106, %v25
  %v110 = vmul.f32 %v106, %v26
  %v111 = vmul.f32 %v106, %v27
  %v112 = vmul.f32 %v106, %v28
  %v113 = vmul.f32 %v106, %v29
  %v114 = vmul.f32 %v106, %v30
  %v115 = vadd.f32 %v95, %v107
  %v116 = vadd.f32 %v96, %v108
  %v117 = vadd.f32 %v97, %v109
  %v118 = vadd.f32 %v98, %v110
  %v119 = vadd.f32 %v99, %v111
  %v120 = vadd.f32 %v100, %v112
  %v121 = vadd.f32 %v101, %v113
  %v122 = vadd.f32 %v102, %v114
  %v123 = vld [vmem:[%s18 + $0x1] sm:$0xff]
  %v124 = vld [vmem:[%s18 + $0x11] sm:$0xff]
  %v125 = vld [vmem:[%s18 + $0x21] sm:$0xff]
  %v126 = vld [vmem:[%s18 + $0x31] sm:$0xff]
  %v127 = vld [vmem:[%s18 + $0x41] sm:$0xff]
  %v128 = vld [vmem:[%s18 + $0x51] sm:$0xff]
  %v129 = vld [vmem:[%s18 + $0x61] sm:$0xff]
  %v130 = vld [vmem:[%s18 + $0x71] sm:$0xff]
  %v131 = vld [vmem:[%s18 + $0x81] sm:$0xff]
  %v132 = vld [vmem:[%s18 + $0x91] sm:$0xff]
  %v133 = vld [vmem:[%s18 + $0xa1] sm:$0xff]
  %v134 = vld [vmem:[%s18 + $0xb1] sm:$0xff]
  %v135 = vlaneseq
  %v136 = vshrl.u32 %v135, 7
  %v137 = vsub.s32 1, %v136
  %v138 = vrot.slane %v12, %v137
  %v139 = vmul.f32 %v138, %v123
  %v140 = vmul.f32 %v138, %v124
  %v141 = vmul.f32 %v138, %v125
  %v142 = vmul.f32 %v138, %v126
  %v143 = vmul.f32 %v138, %v127
  %v144 = vmul.f32 %v138, %v128
  %v145 = vmul.f32 %v138, %v129
  %v146 = vmul.f32 %v138, %v130
  %v147 = vadd.f32 %v115, %v139
  %v148 = vadd.f32 %v116, %v140
  %v149 = vadd.f32 %v117, %v141
  %v150 = vadd.f32 %v118, %v142
  %v151 = vadd.f32 %v119, %v143
  %v152 = vadd.f32 %v120, %v144
  %v153 = vadd.f32 %v121, %v145
  %v154 = vadd.f32 %v122, %v146
  %v155 = vlaneseq
  %v156 = vshrl.u32 %v155, 7
  %v157 = vsub.s32 1, %v156
  %v158 = vrot.slane %v13, %v157
  %v159 = vmul.f32 %v158, %v124
  %v160 = vmul.f32 %v158, %v125
  %v161 = vmul.f32 %v158, %v126
  %v162 = vmul.f32 %v158, %v127
  %v163 = vmul.f32 %v158, %v128
  %v164 = vmul.f32 %v158, %v129
  %v165 = vmul.f32 %v158, %v130
  %v166 = vmul.f32 %v158, %v131
  %v167 = vadd.f32 %v147, %v159
  %v168 = vadd.f32 %v148, %v160
  %v169 = vadd.f32 %v149, %v161
  %v170 = vadd.f32 %v150, %v162
  %v171 = vadd.f32 %v151, %v163
  %v172 = vadd.f32 %v152, %v164
  %v173 = vadd.f32 %v153, %v165
  %v174 = vadd.f32 %v154, %v166
  %v175 = vlaneseq
  %v176 = vshrl.u32 %v175, 7
  %v177 = vsub.s32 1, %v176
  %v178 = vrot.slane %v14, %v177
  %v179 = vmul.f32 %v178, %v125
  %v180 = vmul.f32 %v178, %v126
  %v181 = vmul.f32 %v178, %v127
  %v182 = vmul.f32 %v178, %v128
  %v183 = vmul.f32 %v178, %v129
  %v184 = vmul.f32 %v178, %v130
  %v185 = vmul.f32 %v178, %v131
  %v186 = vmul.f32 %v178, %v132
  %v187 = vadd.f32 %v167, %v179
  %v188 = vadd.f32 %v168, %v180
  %v189 = vadd.f32 %v169, %v181
  %v190 = vadd.f32 %v170, %v182
  %v191 = vadd.f32 %v171, %v183
  %v192 = vadd.f32 %v172, %v184
  %v193 = vadd.f32 %v173, %v185
  %v194 = vadd.f32 %v174, %v186
  %v195 = vlaneseq
  %v196 = vshrl.u32 %v195, 7
  %v197 = vsub.s32 1, %v196
  %v198 = vrot.slane %v15, %v197
  %v199 = vmul.f32 %v198, %v126
  %v200 = vmul.f32 %v198, %v127
  %v201 = vmul.f32 %v198, %v128
  %v202 = vmul.f32 %v198, %v129
  %v203 = vmul.f32 %v198, %v130
  %v204 = vmul.f32 %v198, %v131
  %v205 = vmul.f32 %v198, %v132
  %v206 = vmul.f32 %v198, %v133
  %v207 = vadd.f32 %v187, %v199
  %v208 = vadd.f32 %v188, %v200
  %v209 = vadd.f32 %v189, %v201
  %v210 = vadd.f32 %v190, %v202
  %v211 = vadd.f32 %v191, %v203
  %v212 = vadd.f32 %v192, %v204
  %v213 = vadd.f32 %v193, %v205
  %v214 = vadd.f32 %v194, %v206
  %v215 = vlaneseq
  %v216 = vshrl.u32 %v215, 7
  %v217 = vsub.s32 1, %v216
  %v218 = vrot.slane %v16, %v217
  %v219 = vmul.f32 %v218, %v127
  %v220 = vmul.f32 %v218, %v128
  %v221 = vmul.f32 %v218, %v129
  %v222 = vmul.f32 %v218, %v130
  %v223 = vmul.f32 %v218, %v131
  %v224 = vmul.f32 %v218, %v132
  %v225 = vmul.f32 %v218, %v133
  %v226 = vmul.f32 %v218, %v134
  %v227 = vadd.f32 %v207, %v219
  %v228 = vadd.f32 %v208, %v220
  %v229 = vadd.f32 %v209, %v221
  %v230 = vadd.f32 %v210, %v222
  %v231 = vadd.f32 %v211, %v223
  %v232 = vadd.f32 %v212, %v224
  %v233 = vadd.f32 %v213, %v225
  %v234 = vadd.f32 %v214, %v226
  %v235 = vld [vmem:[%s18 + $0x2] sm:$0xff]
  %v236 = vld [vmem:[%s18 + $0x12] sm:$0xff]
  %v237 = vld [vmem:[%s18 + $0x22] sm:$0xff]
  %v238 = vld [vmem:[%s18 + $0x32] sm:$0xff]
  %v239 = vld [vmem:[%s18 + $0x42] sm:$0xff]
  %v240 = vld [vmem:[%s18 + $0x52] sm:$0xff]
  %v241 = vld [vmem:[%s18 + $0x62] sm:$0xff]
  %v242 = vld [vmem:[%s18 + $0x72] sm:$0xff]
  %v243 = vld [vmem:[%s18 + $0x82] sm:$0xff]
  %v244 = vld [vmem:[%s18 + $0x92] sm:$0xff]
  %v245 = vld [vmem:[%s18 + $0xa2] sm:$0xff]
  %v246 = vld [vmem:[%s18 + $0xb2] sm:$0xff]
  %v247 = vlaneseq
  %v248 = vshrl.u32 %v247, 7
  %v249 = vsub.s32 2, %v248
  %v250 = vrot.slane %v12, %v249
  %v251 = vmul.f32 %v250, %v235
  %v252 = vmul.f32 %v250, %v236
  %v253 = vmul.f32 %v250, %v237
  %v254 = vmul.f32 %v250, %v238
  %v255 = vmul.f32 %v250, %v239
  %v256 = vmul.f32 %v250, %v240
  %v257 = vmul.f32 %v250, %v241
  %v258 = vmul.f32 %v250, %v242
  %v259 = vadd.f32 %v227, %v251
  %v260 = vadd.f32 %v228, %v252
  %v261 = vadd.f32 %v229, %v253
  %v262 = vadd.f32 %v230, %v254
  %v263 = vadd.f32 %v231, %v255
  %v264 = vadd.f32 %v232, %v256
  %v265 = vadd.f32 %v233, %v257
  %v266 = vadd.f32 %v234, %v258
  %v267 = vlaneseq
  %v268 = vshrl.u32 %v267, 7
  %v269 = vsub.s32 2, %v268
  %v270 = vrot.slane %v13, %v269
  %v271 = vmul.f32 %v270, %v236
  %v272 = vmul.f32 %v270, %v237
  %v273 = vmul.f32 %v270, %v238
  %v274 = vmul.f32 %v270, %v239
  %v275 = vmul.f32 %v270, %v240
  %v276 = vmul.f32 %v270, %v241
  %v277 = vmul.f32 %v270, %v242
  %v278 = vmul.f32 %v270, %v243
  %v279 = vadd.f32 %v259, %v271
  %v280 = vadd.f32 %v260, %v272
  %v281 = vadd.f32 %v261, %v273
  %v282 = vadd.f32 %v262, %v274
  %v283 = vadd.f32 %v263, %v275
  %v284 = vadd.f32 %v264, %v276
  %v285 = vadd.f32 %v265, %v277
  %v286 = vadd.f32 %v266, %v278
  %v287 = vlaneseq
  %v288 = vshrl.u32 %v287, 7
  %v289 = vsub.s32 2, %v288
  %v290 = vrot.slane %v14, %v289
  %v291 = vmul.f32 %v290, %v237
  %v292 = vmul.f32 %v290, %v238
  %v293 = vmul.f32 %v290, %v239
  %v294 = vmul.f32 %v290, %v240
  %v295 = vmul.f32 %v290, %v241
  %v296 = vmul.f32 %v290, %v242
  %v297 = vmul.f32 %v290, %v243
  %v298 = vmul.f32 %v290, %v244
  %v299 = vadd.f32 %v279, %v291
  %v300 = vadd.f32 %v280, %v292
  %v301 = vadd.f32 %v281, %v293
  %v302 = vadd.f32 %v282, %v294
  %v303 = vadd.f32 %v283, %v295
  %v304 = vadd.f32 %v284, %v296
  %v305 = vadd.f32 %v285, %v297
  %v306 = vadd.f32 %v286, %v298
  %v307 = vlaneseq
  %v308 = vshrl.u32 %v307, 7
  %v309 = vsub.s32 2, %v308
  %v310 = vrot.slane %v15, %v309
  %v311 = vmul.f32 %v310, %v238
  %v312 = vmul.f32 %v310, %v239
  %v313 = vmul.f32 %v310, %v240
  %v314 = vmul.f32 %v310, %v241
  %v315 = vmul.f32 %v310, %v242
  %v316 = vmul.f32 %v310, %v243
  %v317 = vmul.f32 %v310, %v244
  %v318 = vmul.f32 %v310, %v245
  %v319 = vadd.f32 %v299, %v311
  %v320 = vadd.f32 %v300, %v312
  %v321 = vadd.f32 %v301, %v313
  %v322 = vadd.f32 %v302, %v314
  %v323 = vadd.f32 %v303, %v315
  %v324 = vadd.f32 %v304, %v316
  %v325 = vadd.f32 %v305, %v317
  %v326 = vadd.f32 %v306, %v318
  %v327 = vlaneseq
  %v328 = vshrl.u32 %v327, 7
  %v329 = vsub.s32 2, %v328
  %v330 = vrot.slane %v16, %v329
  %v331 = vmul.f32 %v330, %v239
  %v332 = vmul.f32 %v330, %v240
  %v333 = vmul.f32 %v330, %v241
  %v334 = vmul.f32 %v330, %v242
  %v335 = vmul.f32 %v330, %v243
  %v336 = vmul.f32 %v330, %v244
  %v337 = vmul.f32 %v330, %v245
  %v338 = vmul.f32 %v330, %v246
  %v339 = vadd.f32 %v319, %v331
  %v340 = vadd.f32 %v320, %v332
  %v341 = vadd.f32 %v321, %v333
  %v342 = vadd.f32 %v322, %v334
  %v343 = vadd.f32 %v323, %v335
  %v344 = vadd.f32 %v324, %v336
  %v345 = vadd.f32 %v325, %v337
  %v346 = vadd.f32 %v326, %v338
  %v347 = vld [vmem:[%s18 + $0x3] sm:$0xff]
  %v348 = vld [vmem:[%s18 + $0x13] sm:$0xff]
  %v349 = vld [vmem:[%s18 + $0x23] sm:$0xff]
  %v350 = vld [vmem:[%s18 + $0x33] sm:$0xff]
  %v351 = vld [vmem:[%s18 + $0x43] sm:$0xff]
  %v352 = vld [vmem:[%s18 + $0x53] sm:$0xff]
  %v353 = vld [vmem:[%s18 + $0x63] sm:$0xff]
  %v354 = vld [vmem:[%s18 + $0x73] sm:$0xff]
  %v355 = vld [vmem:[%s18 + $0x83] sm:$0xff]
  %v356 = vld [vmem:[%s18 + $0x93] sm:$0xff]
  %v357 = vld [vmem:[%s18 + $0xa3] sm:$0xff]
  %v358 = vld [vmem:[%s18 + $0xb3] sm:$0xff]
  %v359 = vlaneseq
  %v360 = vshrl.u32 %v359, 7
  %v361 = vsub.s32 3, %v360
  %v362 = vrot.slane %v12, %v361
  %v363 = vmul.f32 %v362, %v347
  %v364 = vmul.f32 %v362, %v348
  %v365 = vmul.f32 %v362, %v349
  %v366 = vmul.f32 %v362, %v350
  %v367 = vmul.f32 %v362, %v351
  %v368 = vmul.f32 %v362, %v352
  %v369 = vmul.f32 %v362, %v353
  %v370 = vmul.f32 %v362, %v354
  %v371 = vadd.f32 %v339, %v363
  %v372 = vadd.f32 %v340, %v364
  %v373 = vadd.f32 %v341, %v365
  %v374 = vadd.f32 %v342, %v366
  %v375 = vadd.f32 %v343, %v367
  %v376 = vadd.f32 %v344, %v368
  %v377 = vadd.f32 %v345, %v369
  %v378 = vadd.f32 %v346, %v370
  %v379 = vlaneseq
  %v380 = vshrl.u32 %v379, 7
  %v381 = vsub.s32 3, %v380
  %v382 = vrot.slane %v13, %v381
  %v383 = vmul.f32 %v382, %v348
  %v384 = vmul.f32 %v382, %v349
  %v385 = vmul.f32 %v382, %v350
  %v386 = vmul.f32 %v382, %v351
  %v387 = vmul.f32 %v382, %v352
  %v388 = vmul.f32 %v382, %v353
  %v389 = vmul.f32 %v382, %v354
  %v390 = vmul.f32 %v382, %v355
  %v391 = vadd.f32 %v371, %v383
  %v392 = vadd.f32 %v372, %v384
  %v393 = vadd.f32 %v373, %v385
  %v394 = vadd.f32 %v374, %v386
  %v395 = vadd.f32 %v375, %v387
  %v396 = vadd.f32 %v376, %v388
  %v397 = vadd.f32 %v377, %v389
  %v398 = vadd.f32 %v378, %v390
  %v399 = vlaneseq
  %v400 = vshrl.u32 %v399, 7
  %v401 = vsub.s32 3, %v400
  %v402 = vrot.slane %v14, %v401
  %v403 = vmul.f32 %v402, %v349
  %v404 = vmul.f32 %v402, %v350
  %v405 = vmul.f32 %v402, %v351
  %v406 = vmul.f32 %v402, %v352
  %v407 = vmul.f32 %v402, %v353
  %v408 = vmul.f32 %v402, %v354
  %v409 = vmul.f32 %v402, %v355
  %v410 = vmul.f32 %v402, %v356
  %v411 = vadd.f32 %v391, %v403
  %v412 = vadd.f32 %v392, %v404
  %v413 = vadd.f32 %v393, %v405
  %v414 = vadd.f32 %v394, %v406
  %v415 = vadd.f32 %v395, %v407
  %v416 = vadd.f32 %v396, %v408
  %v417 = vadd.f32 %v397, %v409
  %v418 = vadd.f32 %v398, %v410
  %v419 = vlaneseq
  %v420 = vshrl.u32 %v419, 7
  %v421 = vsub.s32 3, %v420
  %v422 = vrot.slane %v15, %v421
  %v423 = vmul.f32 %v422, %v350
  %v424 = vmul.f32 %v422, %v351
  %v425 = vmul.f32 %v422, %v352
  %v426 = vmul.f32 %v422, %v353
  %v427 = vmul.f32 %v422, %v354
  %v428 = vmul.f32 %v422, %v355
  %v429 = vmul.f32 %v422, %v356
  %v430 = vmul.f32 %v422, %v357
  %v431 = vadd.f32 %v411, %v423
  %v432 = vadd.f32 %v412, %v424
  %v433 = vadd.f32 %v413, %v425
  %v434 = vadd.f32 %v414, %v426
  %v435 = vadd.f32 %v415, %v427
  %v436 = vadd.f32 %v416, %v428
  %v437 = vadd.f32 %v417, %v429
  %v438 = vadd.f32 %v418, %v430
  %v439 = vlaneseq
  %v440 = vshrl.u32 %v439, 7
  %v441 = vsub.s32 3, %v440
  %v442 = vrot.slane %v16, %v441
  %v443 = vmul.f32 %v442, %v351
  %v444 = vmul.f32 %v442, %v352
  %v445 = vmul.f32 %v442, %v353
  %v446 = vmul.f32 %v442, %v354
  %v447 = vmul.f32 %v442, %v355
  %v448 = vmul.f32 %v442, %v356
  %v449 = vmul.f32 %v442, %v357
  %v450 = vmul.f32 %v442, %v358
  %v451 = vadd.f32 %v431, %v443
  %v452 = vadd.f32 %v432, %v444
  %v453 = vadd.f32 %v433, %v445
  %v454 = vadd.f32 %v434, %v446
  %v455 = vadd.f32 %v435, %v447
  %v456 = vadd.f32 %v436, %v448
  %v457 = vadd.f32 %v437, %v449
  %v458 = vadd.f32 %v438, %v450
  %v459 = vld [vmem:[%s18 + $0x4] sm:$0xff]
  %v460 = vld [vmem:[%s18 + $0x14] sm:$0xff]
  %v461 = vld [vmem:[%s18 + $0x24] sm:$0xff]
  %v462 = vld [vmem:[%s18 + $0x34] sm:$0xff]
  %v463 = vld [vmem:[%s18 + $0x44] sm:$0xff]
  %v464 = vld [vmem:[%s18 + $0x54] sm:$0xff]
  %v465 = vld [vmem:[%s18 + $0x64] sm:$0xff]
  %v466 = vld [vmem:[%s18 + $0x74] sm:$0xff]
  %v467 = vld [vmem:[%s18 + $0x84] sm:$0xff]
  %v468 = vld [vmem:[%s18 + $0x94] sm:$0xff]
  %v469 = vld [vmem:[%s18 + $0xa4] sm:$0xff]
  %v470 = vld [vmem:[%s18 + $0xb4] sm:$0xff]
  %v471 = vlaneseq
  %v472 = vshrl.u32 %v471, 7
  %v473 = vsub.s32 4, %v472
  %v474 = vrot.slane %v12, %v473
  %v475 = vmul.f32 %v474, %v459
  %v476 = vmul.f32 %v474, %v460
  %v477 = vmul.f32 %v474, %v461
  %v478 = vmul.f32 %v474, %v462
  %v479 = vmul.f32 %v474, %v463
  %v480 = vmul.f32 %v474, %v464
  %v481 = vmul.f32 %v474, %v465
  %v482 = vmul.f32 %v474, %v466
  %v483 = vadd.f32 %v451, %v475
  %v484 = vadd.f32 %v452, %v476
  %v485 = vadd.f32 %v453, %v477
  %v486 = vadd.f32 %v454, %v478
  %v487 = vadd.f32 %v455, %v479
  %v488 = vadd.f32 %v456, %v480
  %v489 = vadd.f32 %v457, %v481
  %v490 = vadd.f32 %v458, %v482
  %v491 = vlaneseq
  %v492 = vshrl.u32 %v491, 7
  %v493 = vsub.s32 4, %v492
  %v494 = vrot.slane %v13, %v493
  %v495 = vmul.f32 %v494, %v460
  %v496 = vmul.f32 %v494, %v461
  %v497 = vmul.f32 %v494, %v462
  %v498 = vmul.f32 %v494, %v463
  %v499 = vmul.f32 %v494, %v464
  %v500 = vmul.f32 %v494, %v465
  %v501 = vmul.f32 %v494, %v466
  %v502 = vmul.f32 %v494, %v467
  %v503 = vadd.f32 %v483, %v495
  %v504 = vadd.f32 %v484, %v496
  %v505 = vadd.f32 %v485, %v497
  %v506 = vadd.f32 %v486, %v498
  %v507 = vadd.f32 %v487, %v499
  %v508 = vadd.f32 %v488, %v500
  %v509 = vadd.f32 %v489, %v501
  %v510 = vadd.f32 %v490, %v502
  %v511 = vlaneseq
  %v512 = vshrl.u32 %v511, 7
  %v513 = vsub.s32 4, %v512
  %v514 = vrot.slane %v14, %v513
  %v515 = vmul.f32 %v514, %v461
  %v516 = vmul.f32 %v514, %v462
  %v517 = vmul.f32 %v514, %v463
  %v518 = vmul.f32 %v514, %v464
  %v519 = vmul.f32 %v514, %v465
  %v520 = vmul.f32 %v514, %v466
  %v521 = vmul.f32 %v514, %v467
  %v522 = vmul.f32 %v514, %v468
  %v523 = vadd.f32 %v503, %v515
  %v524 = vadd.f32 %v504, %v516
  %v525 = vadd.f32 %v505, %v517
  %v526 = vadd.f32 %v506, %v518
  %v527 = vadd.f32 %v507, %v519
  %v528 = vadd.f32 %v508, %v520
  %v529 = vadd.f32 %v509, %v521
  %v530 = vadd.f32 %v510, %v522
  %v531 = vlaneseq
  %v532 = vshrl.u32 %v531, 7
  %v533 = vsub.s32 4, %v532
  %v534 = vrot.slane %v15, %v533
  %v535 = vmul.f32 %v534, %v462
  %v536 = vmul.f32 %v534, %v463
  %v537 = vmul.f32 %v534, %v464
  %v538 = vmul.f32 %v534, %v465
  %v539 = vmul.f32 %v534, %v466
  %v540 = vmul.f32 %v534, %v467
  %v541 = vmul.f32 %v534, %v468
  %v542 = vmul.f32 %v534, %v469
  %v543 = vadd.f32 %v523, %v535
  %v544 = vadd.f32 %v524, %v536
  %v545 = vadd.f32 %v525, %v537
  %v546 = vadd.f32 %v526, %v538
  %v547 = vadd.f32 %v527, %v539
  %v548 = vadd.f32 %v528, %v540
  %v549 = vadd.f32 %v529, %v541
  %v550 = vadd.f32 %v530, %v542
  %v551 = vlaneseq
  %v552 = vshrl.u32 %v551, 7
  %v553 = vsub.s32 4, %v552
  %v554 = vrot.slane %v16, %v553
  %v555 = vmul.f32 %v554, %v463
  %v556 = vmul.f32 %v554, %v464
  %v557 = vmul.f32 %v554, %v465
  %v558 = vmul.f32 %v554, %v466
  %v559 = vmul.f32 %v554, %v467
  %v560 = vmul.f32 %v554, %v468
  %v561 = vmul.f32 %v554, %v469
  %v562 = vmul.f32 %v554, %v470
  %v563 = vadd.f32 %v543, %v555
  %v564 = vadd.f32 %v544, %v556
  %v565 = vadd.f32 %v545, %v557
  %v566 = vadd.f32 %v546, %v558
  %v567 = vadd.f32 %v547, %v559
  %v568 = vadd.f32 %v548, %v560
  %v569 = vadd.f32 %v549, %v561
  %v570 = vadd.f32 %v550, %v562
  %571 = vst [vmem:[%s2] sm:$0xff] %v563
  %572 = vst [vmem:[%s2 + $0x8] sm:$0xff] %v564
  %573 = vst [vmem:[%s2 + $0x10] sm:$0xff] %v565
  %574 = vst [vmem:[%s2 + $0x18] sm:$0xff] %v566
  %575 = vst [vmem:[%s2 + $0x20] sm:$0xff] %v567
  %576 = vst [vmem:[%s2 + $0x28] sm:$0xff] %v568
  %577 = vst [vmem:[%s2 + $0x30] sm:$0xff] %v569
  %578 = vst [vmem:[%s2 + $0x38] sm:$0xff] %v570
  // Predicated region
  $region10: #{lin_idwt2d_forward.1} parent=0 // pred_check
    _
  $region11: #{lin_idwt2d_forward.1} parent=0 // pred_check_branch
    %580 = sbr.rel (0) target = $region13
  $region12: #{lin_idwt2d_forward.1} parent=0 // pred_region
    _
  $region13: #{lin_idwt2d_forward.1} parent=0 // pred_fallthru
    _
  // Predicated region
  $region14: #{lin_idwt2d_forward.1} parent=0 // pred_check
    _
  $region15: #{lin_idwt2d_forward.1} parent=0 // pred_check_branch
    %582 = sbr.rel (0) target = $region17
  $region16: #{lin_idwt2d_forward.1} parent=0 // pred_region
    _
  $region17: #{lin_idwt2d_forward.1} parent=0 // pred_fallthru
    _

</llo_original>
